<compile_context>
chip_gen: v6e
topology: v6e:2x2x1
jax: 0.10.0
libtpu: 0.0.40
codegen_flags: <defaults>
</compile_context>

<pallas_src>
import math

import jax
import jax.numpy as jnp
from jax.experimental import pallas as pl
from jax.experimental.pallas import tpu as pltpu


def make_positional_encoding(d_model: int, max_len: int = 5000,
                             dtype=jnp.float32) -> jnp.ndarray:
    """Build the (max_len, 1, d_model) sinusoidal buffer, same as torch init.

    Build it directly in the model dtype so the forward pass never has to
    cast it per call (a per-call astype is a full HBM read+write of pe).
    """
    assert d_model % 2 == 0, "sinusoidal PE requires an even d_model"
    position = jnp.arange(0, max_len, dtype=jnp.float32)[:, None]        # (L, 1)
    div_term = jnp.exp(
        jnp.arange(0, d_model, 2, dtype=jnp.float32)
        * (-math.log(10000.0) / d_model))                                # (D/2,)
    angles = position * div_term                                         # (L, D/2)
    pe = jnp.zeros((max_len, d_model), dtype=jnp.float32)
    pe = pe.at[:, 0::2].set(jnp.sin(angles))
    pe = pe.at[:, 1::2].set(jnp.cos(angles))
    # unsqueeze(0).transpose(0, 1) -> (max_len, 1, d_model)
    return pe[:, None, :].astype(dtype)


# ---------------------------------------------------------------------------
# Kernels
# ---------------------------------------------------------------------------

def _pe_add_kernel_3d(x_ref, pe_ref, o_ref):
    # x_ref / o_ref: (TS, B, D); pe_ref: (TS, D) -> broadcast over the batch
    # axis in-kernel (no (TS, 1, D) block, so no 1->8 sublane padding for pe).
    o_ref[...] = x_ref[...] + pe_ref[...][:, None, :]


def _make_pe_add_kernel_flat(tb: int, d: int):
    def kernel(x_ref, pe_ref, o_ref):
        # x_ref / o_ref: (TS, tb*D) lane-dense; pe_ref: (TS, D).
        pe_t = pe_ref[...]
        # Statically unrolled per-batch slice add: D is a multiple of 128 on
        # this path, so every slice is 128-lane aligned -> unmasked vst, no
        # replicated pe temporary, no extra VMEM write+read per grid step.
        for b in range(tb):
            sl = slice(b * d, (b + 1) * d)
            o_ref[:, sl] = x_ref[:, sl] + pe_t
    return kernel


# ---------------------------------------------------------------------------
# Wrappers
# ---------------------------------------------------------------------------

_TARGET_X_BLOCK_BYTES = 3 << 20   # ~3 MiB of x per block (~85%+ HBM roofline knee)
_MAX_X_BLOCK_BYTES = 4 << 20      # keeps 2*(x+out+pe) blocks well under VMEM on all gens
_VMEM_LIMIT_BYTES = 32 << 20      # raises v5e's 16 MiB scoped default; safe on v7x (64 MiB)


def _round_up(n: int, m: int) -> int:
    return ((n + m - 1) // m) * m


def _forward_flat(x, pe2, bs, tb, vmem_limit, donate_x):
    S, B, D = x.shape
    x2 = x.reshape(S, B * D)                  # free reshape (row-major contiguous)
    grid = (pl.cdiv(S, bs), pl.cdiv(B, tb))
    out2 = pl.pallas_call(
        _make_pe_add_kernel_flat(tb, D),
        out_shape=jax.ShapeDtypeStruct((S, B * D), x.dtype),
        grid_spec=pltpu.PrefetchScalarGridSpec(
            num_scalar_prefetch=0,
            grid=grid,
            in_specs=[
                pl.BlockSpec((bs, tb * D), lambda i, j: (i, j)),
                pl.BlockSpec((bs, D), lambda i, j: (i, 0)),
            ],
            out_specs=pl.BlockSpec((bs, tb * D), lambda i, j: (i, j)),
        ),
        compiler_params=pltpu.CompilerParams(
            dimension_semantics=("parallel", "parallel"),
            vmem_limit_bytes=vmem_limit),
        input_output_aliases=({0: 0} if donate_x else {}),
    )(x2, pe2)
    return out2.reshape(S, B, D)


def _forward_3d(x, pe2, bs, vmem_limit, donate_x):
    S, B, D = x.shape
    return pl.pallas_call(
        _pe_add_kernel_3d,
        out_shape=jax.ShapeDtypeStruct((S, B, D), x.dtype),
        grid_spec=pltpu.PrefetchScalarGridSpec(
            num_scalar_prefetch=0,
            grid=(pl.cdiv(S, bs),),
            in_specs=[
                pl.BlockSpec((bs, B, D), lambda i: (i, 0, 0)),
                pl.BlockSpec((bs, D), lambda i: (i, 0)),
            ],
            out_specs=pl.BlockSpec((bs, B, D), lambda i: (i, 0, 0)),
        ),
        compiler_params=pltpu.CompilerParams(
            dimension_semantics=("parallel",),
            vmem_limit_bytes=vmem_limit),
        input_output_aliases=({0: 0} if donate_x else {}),
    )(x, pe2)


def positional_encoding_forward(x: jnp.ndarray, pe: jnp.ndarray,
                                *, block_s: int | None = None,
                                donate_x: bool = False) -> jnp.ndarray:
    """x: (S, B, D); pe: (max_len, 1, D). Returns x + pe[:S]."""
    S, B, D = x.shape
    assert pe.shape[0] >= S and pe.shape[-1] == D
    itemsize = x.dtype.itemsize

    # pe should already be in the model dtype (make_positional_encoding(dtype=...));
    # a per-call astype costs an extra HBM round-trip of the whole buffer.
    if pe.dtype != x.dtype:
        pe = pe.astype(x.dtype)
    pe2 = pe.reshape(pe.shape[0], D)          # (max_len, D), free reshape

    flat = (D % 128 == 0)

    # Batches per lane-block (flat path only): guard wide rows so even the
    # minimum 8-row block can never blow v7x's 64 MiB VMEM.
    tb = B
    if flat:
        while tb > 1 and 8 * tb * D * itemsize > _MAX_X_BLOCK_BYTES:
            tb = (tb + 1) // 2
    row_bytes = (tb if flat else B) * D * itemsize
    # TODO(synk): if a single (8, D) tile still exceeds the budget (absurdly
    # large D on the non-flat path) a further grid axis tiling D is needed.

    # Sequence tile: ~3 MiB of x per block, sublane-aligned, and at least two
    # grid steps along S (when S allows) so both v7x TensorCores get work.
    if block_s is None:
        bs = max(8, min(_TARGET_X_BLOCK_BYTES // row_bytes, _round_up(S, 8)))
        bs = max(8, (bs // 8) * 8)
        if bs >= S and S > 8:
            bs = _round_up(pl.cdiv(S, 2), 8)
    else:
        bs = max(8, (min(block_s, _round_up(S, 8)) // 8) * 8)

    x_block_bytes = bs * row_bytes
    pe_block_bytes = bs * D * itemsize
    vmem_limit = max(_VMEM_LIMIT_BYTES,
                     2 * (2 * x_block_bytes + pe_block_bytes) + (2 << 20))

    if flat:
        return _forward_flat(x, pe2, bs, tb, vmem_limit, donate_x)
    return _forward_3d(x, pe2, bs, vmem_limit, donate_x)


# ---------------------------------------------------------------------------
# Demo / self-check
# ---------------------------------------------------------------------------

if __name__ == "__main__":
    root = jax.random.PRNGKey(0)
    k1, k2, k3, k4 = jax.random.split(root, 4)

    # Case 1: small shapes consistent with the module (seq=8, batch=2, d=32),
    # exercises the 3-D fallback path (D % 128 != 0), single grid step.
    S, B, D = 8, 2, 32
    pe = make_positional_encoding(D, max_len=64)
    x = jax.random.normal(k1, (S, B, D), dtype=jnp.float32)
    out = jax.block_until_ready(positional_encoding_forward(x, pe))
    ref = x + pe[:S]
    assert out.shape == (S, B, D)
    assert jnp.allclose(out, ref, atol=1e-6), "case 1 mismatch vs reference"

    # Case 2: lane-dense flat path, multi-block pipelined grid (D % 128 == 0),
    # explicit block_s override.
    S2, B2, D2 = 384, 4, 128
    pe2 = make_positional_encoding(D2, max_len=512)
    x2 = jax.random.normal(k2, (S2, B2, D2), dtype=jnp.float32)
    out2 = jax.block_until_ready(
        positional_encoding_forward(x2, pe2, block_s=128))
    ref2 = x2 + pe2[:S2]
    assert jnp.allclose(out2, ref2, atol=1e-6), "case 2 mismatch vs reference"

    # Case 3: 3-D path with multiple grid blocks and a padded boundary block.
    S3, B3, D3 = 40, 2, 32
    pe3 = make_positional_encoding(D3, max_len=64)
    x3 = jax.random.normal(k3, (S3, B3, D3), dtype=jnp.float32)
    out3 = jax.block_until_ready(
        positional_encoding_forward(x3, pe3, block_s=16))
    ref3 = x3 + pe3[:S3]
    assert jnp.allclose(out3, ref3, atol=1e-6), "case 3 mismatch vs reference"

    # Case 4: bf16 flat path, auto block sizing (forces >=2 S blocks for v7x),
    # pe built directly in the model dtype (no per-call astype).
    S4, B4, D4 = 16, 2, 128
    pe4 = make_positional_encoding(D4, max_len=64, dtype=jnp.bfloat16)
    x4 = jax.random.normal(k4, (S4, B4, D4), dtype=jnp.bfloat16)
    out4 = jax.block_until_ready(positional_encoding_forward(x4, pe4))
    ref4 = x4 + pe4[:S4]
    assert jnp.allclose(out4.astype(jnp.float32), ref4.astype(jnp.float32),
                        atol=1e-2), "case 4 mismatch vs reference"

    print("KERNEL_OK")
</pallas_src>

<mosaic_0001>
module attributes {stable_mosaic.version = 11 : i64} {
  func.func @_pe_add_kernel_3d(%arg0: i32, %arg1: memref<8x2x32xf32, #tpu.memory_space<vmem>>, %arg2: memref<8x32xf32, #tpu.memory_space<vmem>>, %arg3: memref<8x2x32xf32, #tpu.memory_space<vmem>>) attributes {dimension_semantics = [#tpu.dimension_semantics<parallel>], iteration_bounds = array<i64: 1>, scalar_prefetch = 0 : i64, scratch_operands = 0 : i64, tpu.core_type = #tpu.core_type<tc>, window_params = [{transform_indices = @transform_0, window_bounds = array<i64: 8, 2, 32>}, {transform_indices = @transform_1, window_bounds = array<i64: 8, 32>}, {transform_indices = @transform_2, window_bounds = array<i64: 8, 2, 32>}]} {
    %c0 = arith.constant 0 : index
    %c0_0 = arith.constant 0 : index
    %c0_1 = arith.constant 0 : index
    %0 = vector.load %arg1[%c0, %c0_0, %c0_1] : memref<8x2x32xf32, #tpu.memory_space<vmem>>, vector<8x2x32xf32>
    %c0_2 = arith.constant 0 : index
    %c0_3 = arith.constant 0 : index
    %1 = vector.load %arg2[%c0_2, %c0_3] : memref<8x32xf32, #tpu.memory_space<vmem>>, vector<8x32xf32>
    %2 = vector.shape_cast %1 : vector<8x32xf32> to vector<8x1x32xf32>
    %3 = vector.broadcast %2 : vector<8x1x32xf32> to vector<8x2x32xf32>
    %4 = arith.addf %0, %3 : vector<8x2x32xf32>
    %c0_4 = arith.constant 0 : index
    %c0_5 = arith.constant 0 : index
    %c0_6 = arith.constant 0 : index
    %5 = vector.load %arg3[%c0_4, %c0_5, %c0_6] : memref<8x2x32xf32, #tpu.memory_space<vmem>>, vector<8x2x32xf32>
    tpu.vector_store %arg3[%c0_4, %c0_5, %c0_6], %4 {strides = array<i32>} : memref<8x2x32xf32, #tpu.memory_space<vmem>>, vector<8x2x32xf32>,
    return
  }
  func.func @transform_0(%arg0: i32) -> (i32, i32, i32) {
    %c0_i32 = arith.constant 0 : i32
    %c0_i32_0 = arith.constant 0 : i32
    %c0_i32_1 = arith.constant 0 : i32
    return %arg0, %c0_i32, %c0_i32_0 : i32, i32, i32
  }
  func.func @transform_1(%arg0: i32) -> (i32, i32) {
    %c0_i32 = arith.constant 0 : i32
    %c0_i32_0 = arith.constant 0 : i32
    return %arg0, %c0_i32 : i32, i32
  }
  func.func @transform_2(%arg0: i32) -> (i32, i32, i32) {
    %c0_i32 = arith.constant 0 : i32
    %c0_i32_0 = arith.constant 0 : i32
    %c0_i32_1 = arith.constant 0 : i32
    return %arg0, %c0_i32, %c0_i32_0 : i32, i32, i32
  }
}

</mosaic_0001>

<llo_original>
// kernel: tpu_custom_call.1
$region0: #{tpu_custom_call.1}
  #allocation0 [shape = 'u32[]', space=smem, size = 0x4, offset = 0x4, fixed_abs, tag = 'smem constant byte address 0x4 - core index']
  #allocation1 [shape = 'u32[144,128]{1,0:T(1,128)}', space=vmem, size = 0x12000, scoped, tag = 'internal scratch']
  %s0 = inlined_call_operand.vmem [shape: f32[8,2,32], index: 0, kind: input, shape index: {}]
  %s1 = inlined_call_operand.vmem [shape: f32[64,32], index: 1, kind: input, shape index: {}]
  %s2 = inlined_call_operand.hbm [shape: f32[8,2,32], index: 2, kind: output, shape index: {}]
  %s3 = sld [smem:[#allocation0]]
  $region18: #{tpu_custom_call.1} parent=0
    _
  %s5 = ssub.s32 1, %s3
  %s6 = scalar_select 0, %s5, %s3
  $region1: #{tpu_custom_call.1} parent=0
    #allocation2 [shape = 'u8[8192]{0}', space=vmem, size = 0x2000, scoped, tag = 'output window, operand 0, single buffered']
    #allocation3 [shape = 's32[1]{0}', space=sflag, size = 0x4, scoped, tag = 'scoped memory for tpu_custom_call.1']
    %7 = vsyncpa [#allocation3], 0
    // Predicated region
    $region2: #{tpu_custom_call.1} parent=1 // pred_check
      _
    $region3: #{tpu_custom_call.1} parent=1 // pred_check_branch
      %9 = sbr.rel (0) target = $region5
    $region4: #{tpu_custom_call.1} parent=1 // pred_region
      _
    $region5: #{tpu_custom_call.1} parent=1 // pred_fallthru
      _
    // Predicated region
    $region6: #{tpu_custom_call.1} parent=1 // pred_check
      _
    $region7: #{tpu_custom_call.1} parent=1 // pred_check_branch
      %11 = sbr.rel (0) target = $region9
    $region8: #{tpu_custom_call.1} parent=1 // pred_region
      _
    $region9: #{tpu_custom_call.1} parent=1 // pred_fallthru
      _
    %v12 = vld [vmem:[%s0] sm:$0x3]
    %v13 = vld [vmem:[%s0 + $0x2] sm:$0x3]
    %v14 = vld [vmem:[%s0 + $0x4] sm:$0x3]
    %v15 = vld [vmem:[%s0 + $0x6] sm:$0x3]
    %v16 = vld [vmem:[%s0 + $0x8] sm:$0x3]
    %v17 = vld [vmem:[%s0 + $0xa] sm:$0x3]
    %v18 = vld [vmem:[%s0 + $0xc] sm:$0x3]
    %v19 = vld [vmem:[%s0 + $0xe] sm:$0x3]
    %v20 = vld [vmem:[%s1] sm:$0xff]
    %v22 = vcombine.high %v20, %v20
    %v24 = vunpack.c.l.s4 1966171168
    %v25 = vunpack.c.0.s8 %v24
    %v26 = vlaneseq
    %v27 = vshrl.u32 %v26, 7
    %v28 = vsub.s32 %v25, %v27
    %v29 = vrot.slane %v20, %v28
    %v31 = vunpack.c.l.s4 1966171168
    %v32 = vunpack.c.0.s8 %v31
    %v33 = vlaneseq
    %v34 = vshrl.u32 %v33, 7
    %v35 = vsub.s32 %v32, %v34
    %v36 = vrot.slane %v22, %v35
    %v37 = vcombine.high %v29, %v29
    %v38 = vcombine.high %v36, %v36
    %v40 = vunpack.c.l.s4 1966171168
    %v41 = vunpack.c.0.s8 %v40
    %v42 = vlaneseq
    %v43 = vshrl.u32 %v42, 7
    %v44 = vsub.s32 %v41, %v43
    %v45 = vrot.slane %v29, %v44
    %v47 = vunpack.c.l.s4 1966171168
    %v48 = vunpack.c.0.s8 %v47
    %v49 = vlaneseq
    %v50 = vshrl.u32 %v49, 7
    %v51 = vsub.s32 %v48, %v50
    %v52 = vrot.slane %v36, %v51
    %v54 = vunpack.c.l.s4 1966171168
    %v55 = vunpack.c.0.s8 %v54
    %v56 = vlaneseq
    %v57 = vshrl.u32 %v56, 7
    %v58 = vsub.s32 %v55, %v57
    %v59 = vrot.slane %v37, %v58
    %v61 = vunpack.c.l.s4 1966171168
    %v62 = vunpack.c.0.s8 %v61
    %v63 = vlaneseq
    %v64 = vshrl.u32 %v63, 7
    %v65 = vsub.s32 %v62, %v64
    %v66 = vrot.slane %v38, %v65
    %v67 = vcombine.high %v45, %v45
    %v68 = vcombine.high %v52, %v52
    %v69 = vcombine.high %v59, %v59
    %v70 = vcombine.high %v66, %v66
    %v71 = vlaneseq
    %v72 = vshrl.u32 %v71, 7
    %v73 = vsub.s32 0, %v72
    %v74 = vrot.slane %v45, %v73
    %v75 = vlaneseq
    %v76 = vshrl.u32 %v75, 7
    %v77 = vsub.s32 0, %v76
    %v78 = vrot.slane %v59, %v77
    %v79 = vlaneseq
    %v80 = vshrl.u32 %v79, 7
    %v81 = vsub.s32 0, %v80
    %v82 = vrot.slane %v67, %v81
    %v83 = vlaneseq
    %v84 = vshrl.u32 %v83, 7
    %v85 = vsub.s32 0, %v84
    %v86 = vrot.slane %v69, %v85
    %v87 = vlaneseq
    %v88 = vshrl.u32 %v87, 7
    %v89 = vsub.s32 0, %v88
    %v90 = vrot.slane %v52, %v89
    %v91 = vlaneseq
    %v92 = vshrl.u32 %v91, 7
    %v93 = vsub.s32 0, %v92
    %v94 = vrot.slane %v66, %v93
    %v95 = vlaneseq
    %v96 = vshrl.u32 %v95, 7
    %v97 = vsub.s32 0, %v96
    %v98 = vrot.slane %v68, %v97
    %v99 = vlaneseq
    %v100 = vshrl.u32 %v99, 7
    %v101 = vsub.s32 0, %v100
    %v102 = vrot.slane %v70, %v101
    %v111 = vadd.f32 %v12, %v74
    %v112 = vadd.f32 %v13, %v78
    %v113 = vadd.f32 %v14, %v82
    %v114 = vadd.f32 %v15, %v86
    %v115 = vadd.f32 %v16, %v90
    %v116 = vadd.f32 %v17, %v94
    %v117 = vadd.f32 %v18, %v98
    %v118 = vadd.f32 %v19, %v102
    %vm119 = vcmask 254976
    %120 = vst.msk [vmem:[#allocation2] sm:$0x3] %vm119, %v111
    %121 = vst.msk [vmem:[#allocation2 + $0x2] sm:$0x3] %vm119, %v112
    %122 = vst.msk [vmem:[#allocation2 + $0x4] sm:$0x3] %vm119, %v113
    %123 = vst.msk [vmem:[#allocation2 + $0x6] sm:$0x3] %vm119, %v114
    %124 = vst.msk [vmem:[#allocation2 + $0x8] sm:$0x3] %vm119, %v115
    %125 = vst.msk [vmem:[#allocation2 + $0xa] sm:$0x3] %vm119, %v116
    %126 = vst.msk [vmem:[#allocation2 + $0xc] sm:$0x3] %vm119, %v117
    %127 = vst.msk [vmem:[#allocation2 + $0xe] sm:$0x3] %vm119, %v118
    // Predicated region
    $region10: #{tpu_custom_call.1} parent=1 // pred_check
      _
    $region11: #{tpu_custom_call.1} parent=1 // pred_check_branch
      %129 = sbr.rel (0) target = $region13
    $region12: #{tpu_custom_call.1} parent=1 // pred_region
      %s131 = ssub.s32 256, 256
      %132 = vsyncadd [#allocation3], %s131
      %s133 = sshll.u32 [#allocation2], 4
      %s134 = int_to_ptr.vmem [resolvable:$true] %s133
      %139 = dma.vmem_to_hbm [thread:$0]  %s134, 256, %s2, [#allocation3], 32, 32, 2
    $region13: #{tpu_custom_call.1} parent=1 // pred_fallthru
      _
    // Predicated region
    $region14: #{tpu_custom_call.1} parent=1 // pred_check
      _
    $region15: #{tpu_custom_call.1} parent=1 // pred_check_branch
      %141 = sbr.rel (0) target = $region17
    $region16: #{tpu_custom_call.1} parent=1 // pred_region
      %142 = dma.done [#allocation3], 256
    $region17: #{tpu_custom_call.1} parent=1 // pred_fallthru
      _
    %143 = vsyncpa [#allocation3], 1

</llo_original>
